<compile_context>
chip_gen: v7x
topology: tpu7x:2x2x1
jax: 0.10.0
libtpu: 0.0.40
codegen_flags: <defaults>
</compile_context>

<pallas_src>
import functools

import jax
import jax.numpy as jnp
import numpy as np
from jax.experimental import pallas as pl
from jax.experimental.pallas import tpu as pltpu

_LANES = 128
_ROW_UNIT = 32         # sublane multiple safe for f32 / bf16 / int8 blocks
_TM_MAX = 2048         # (2048,128) f32 block = 1 MiB; well under VMEM budgets
_SEESAW_EPS = 1e-6     # BinarySeesawLoss.eps
_DICE_EPS = 1e-7       # smp DiceLoss default eps
_TEMPERATURE = 1.0     # BinarySeesawLoss default used by WeightedsumDiceSeesaw
_Z_CLIP = 40.0         # exp(+/-40) is finite in f32; loss already saturated there
_PAD_LOGIT = -40.0     # sigmoid(pad) ~ 4e-18  -> negligible dice-cardinality leak
_PAD_TARGET = 2        # sentinel: (t==0) and (t==1) both false for pad pixels


def _make_partials_kernel(q, tm):
    """Per-tile partial reductions, accumulated into a per-core (48,128) slab.

    Slab rows (6 quantities x 8 sublanes, lane+sublane summed in the wrapper):
      [ 0: 8)  sum  t1 * log(p_sel + eps) * C_sel   (seesaw vessel term, negated later)
      [ 8:16)  sum  t0 * log(p_sel + eps) * C_sel   (seesaw background term, negated later)
      [16:24)  sum  (targets == 1)                  (N_v count)
      [24:32)  sum  (targets == 0)                  (N_b count)
      [32:40)  sum  sigmoid(z) * t1                 (dice intersection)
      [40:48)  sum  sigmoid(z) + t1                 (dice cardinality)
    """
    n_groups = tm // 8

    def vreg_sum(x):           # (tm,128) -> (8,128), pure vreg adds (no XLU)
        return x.reshape(n_groups, 8, _LANES).sum(axis=0)

    def kernel(z_ref, t_ref, out_ref):
        @pl.when(pl.program_id(1) == 0)
        def _init():
            out_ref[...] = jnp.zeros_like(out_ref)

        z = z_ref[...].astype(jnp.float32)
        if _TEMPERATURE != 1.0:
            z = z * _TEMPERATURE
        z = jnp.clip(z, -_Z_CLIP, _Z_CLIP)          # no f32 exp overflow / NaN

        tf = t_ref[...].astype(jnp.float32)
        is_v = tf == 1.0
        t1 = is_v.astype(jnp.float32)               # targets == 1
        t0 = (tf == 0.0).astype(jnp.float32)        # targets == 0 (pads: both 0)

        # 2-class softmax over [-z, z]; eps added to the denominator as in the
        # reference.  One exp, everything else reciprocals.
        e_pos = jnp.exp(z)
        e_neg = pl.reciprocal(e_pos)                         # == exp(-z)
        inv_denom = pl.reciprocal(e_pos + e_neg + _SEESAW_EPS, approx=True)

        # Select the target-class quantities once (binary targets).
        e_sel = jnp.where(is_v, e_pos, e_neg)
        e_opp = jnp.where(is_v, e_neg, e_pos)
        p_sel = e_sel * inv_denom                            # prob of target class

        # Compensation C = clamp(max(1, (p_other/p_target)^q), max=5).
        # p_other/p_target == e_opp/e_sel == e_opp^2  -> pure VPU muls for q==2.
        if q == 2.0:
            r2 = e_opp * e_opp
            pow_sel = r2 * r2
        else:
            pow_sel = jnp.exp((2.0 * q) * jnp.where(is_v, -z, z))
        c_sel = jnp.minimum(jnp.maximum(1.0, pow_sel), 5.0)

        # Single log per element; negation folded into the scalar tail.
        s = jnp.log(p_sel + _SEESAW_EPS) * c_sel

        # Dice (from_logits=True): sigmoid(z) = 1 / (1 + exp(-z)).
        p_sig = pl.reciprocal(1.0 + e_neg, approx=True)

        out_ref[...] += jnp.concatenate(
            [vreg_sum(t1 * s),
             vreg_sum(t0 * s),
             vreg_sum(t1),
             vreg_sum(t0),
             vreg_sum(p_sig * t1),
             vreg_sum(p_sig + t1)],
            axis=0)

    return kernel


def _guess_num_cores():
    """2-way grid split only on chips with >1 TensorCore per device."""
    try:
        kind = jax.devices()[0].device_kind.lower()
    except Exception:
        return 1
    return 2 if any(tag in kind for tag in ("v4", "v5p", "v7")) else 1


@functools.partial(jax.jit, static_argnames=("dice_weight", "seesaw_weight", "p", "q"))
def weighted_dice_seesaw_loss(logits, targets, *, dice_weight=0.5,
                              seesaw_weight=0.5, p=0.8, q=2.0):
    """Combined 0.5*Dice + 0.5*Seesaw loss. logits/targets: [B,1,H,W].

    For lowest HBM traffic pass targets as uint8/int8 {0,1} masks (they are
    streamed in their native dtype when no padding pass is required).
    """
    assert logits.ndim == 4 and logits.shape[1] == 1, "expect [B,1,H,W] logits"
    assert logits.shape == targets.shape, "logits/targets shape mismatch"

    n_elem = int(np.prod(logits.shape))
    rows = -(-n_elem // _LANES)                       # ceil

    if rows <= _TM_MAX:
        tm = -(-rows // _ROW_UNIT) * _ROW_UNIT
    else:
        tm = _TM_MAX
    total_steps = -(-rows // tm)
    num_par = 2 if (total_steps >= 2 and _guess_num_cores() >= 2) else 1
    steps_per_core = -(-total_steps // num_par)
    padded_rows = num_par * steps_per_core * tm
    padded_elems = padded_rows * _LANES
    pad = padded_elems - n_elem

    z_flat = logits.reshape(-1)
    t_flat = targets.reshape(-1)
    if pad:
        # Pads contribute exactly 0 to every partial sum: sentinel target 2
        # makes t1 = t0 = 0 and the -40 logit makes sigmoid ~ 4e-18, so no
        # in-kernel masking or scalar-tail correction is needed.
        # TODO(synk): for very large ragged inputs this pad pass re-streams both
        # tensors through HBM once; a main-kernel + tiny-JAX-tail split would avoid it.
        z_flat = jnp.pad(z_flat, (0, pad), constant_values=_PAD_LOGIT)
        t_flat = jnp.pad(t_flat.astype(jnp.int8), (0, pad),
                         constant_values=_PAD_TARGET)
    elif t_flat.dtype == jnp.bool_:
        t_flat = t_flat.astype(jnp.int8)
    z2 = z_flat.reshape(padded_rows, _LANES)
    t2 = t_flat.reshape(padded_rows, _LANES)

    kernel = _make_partials_kernel(q, tm)
    in_map = lambda c, i: (c * steps_per_core + i, 0)

    # TODO(synk): on v7x, pltpu.CORE_PARALLEL (or pl.core_map) on the leading axis
    # would guarantee the 2-way split lands on both TensorCores.
    out = pl.pallas_call(
        kernel,
        out_shape=jax.ShapeDtypeStruct((num_par, 48, _LANES), jnp.float32),
        grid_spec=pltpu.PrefetchScalarGridSpec(
            num_scalar_prefetch=0,
            grid=(num_par, steps_per_core),
            in_specs=[
                pl.BlockSpec((tm, _LANES), in_map),
                pl.BlockSpec((tm, _LANES), in_map),
            ],
            out_specs=pl.BlockSpec((None, 48, _LANES), lambda c, i: (c, 0, 0)),
        ),
        compiler_params=pltpu.CompilerParams(
            dimension_semantics=("parallel", "arbitrary"),
            vmem_limit_bytes=32 * 1024 * 1024),
    )(z2, t2)

    slab = jnp.sum(out, axis=0)                               # (48, 128)
    sums = slab.reshape(6, 8, _LANES).sum(axis=(1, 2))        # (6,)
    s_v, s_b = -sums[0], -sums[1]
    cnt_v, cnt_b, inter, card = sums[2], sums[3], sums[4], sums[5]

    # ---- Seesaw scalar tail (mitigation factors depend on global counts) ----
    n_v = cnt_v + _SEESAW_EPS
    n_b = cnt_b + _SEESAW_EPS
    m_vb = jnp.minimum(1.0, (n_b / n_v) ** p)
    m_bv = jnp.clip(jnp.minimum(1.0, (n_v / n_b) ** p), 0.1, None)
    seesaw = (m_vb * s_v + m_bv * s_b) / jnp.float32(n_elem)

    # ---- Dice scalar tail (smp BINARY_MODE, smooth=0, eps=1e-7) ----
    score = (2.0 * inter) / jnp.maximum(card, _DICE_EPS)
    dice = (1.0 - score) * (cnt_v > 0).astype(jnp.float32)

    return dice_weight * dice + seesaw_weight * seesaw


def _reference_loss(logits, targets, dice_weight=0.5, seesaw_weight=0.5,
                    p=0.8, q=2.0):
    """Pure-JAX reference mirroring the PyTorch module (for sanity checking)."""
    z = logits[:, 0].astype(jnp.float32) * _TEMPERATURE
    t = targets[:, 0].astype(jnp.float32)
    e_pos, e_neg = jnp.exp(z), jnp.exp(-z)
    denom = e_pos + e_neg + _SEESAW_EPS
    p_v, p_b = e_pos / denom, e_neg / denom
    n_v = jnp.sum(t == 1) + _SEESAW_EPS
    n_b = jnp.sum(t == 0) + _SEESAW_EPS
    m_vb = jnp.minimum(1.0, (n_b / n_v) ** p)
    m_bv = jnp.clip(jnp.minimum(1.0, (n_v / n_b) ** p), 0.1, None)
    c_vb = jnp.clip(jnp.maximum(1.0, (p_b / p_v) ** q), None, 5.0)
    c_bv = jnp.clip(jnp.maximum(1.0, (p_v / p_b) ** q), None, 5.0)
    loss_v = -t * jnp.log(p_v + _SEESAW_EPS) * (m_vb * c_vb)
    loss_b = -(1.0 - t) * jnp.log(p_b + _SEESAW_EPS) * (m_bv * c_bv)
    seesaw = jnp.mean(loss_v + loss_b)
    p_sig = jax.nn.sigmoid(z)
    inter = jnp.sum(p_sig * t)
    card = jnp.sum(p_sig + t)
    score = 2.0 * inter / jnp.maximum(card, _DICE_EPS)
    dice = (1.0 - score) * (jnp.sum(t) > 0).astype(jnp.float32)
    return dice_weight * dice + seesaw_weight * seesaw


if __name__ == "__main__":
    key = jax.random.PRNGKey(0)
    k_logits, k_targets, k_logits2, k_targets2 = jax.random.split(key, 4)

    # Case 1: lane-aligned small slab (2*32*32 pixels -> (16,128), padded to (32,128)).
    B, C, H, W = 2, 1, 32, 32
    logits = jax.random.normal(k_logits, (B, C, H, W), dtype=jnp.float32)
    targets = jax.random.bernoulli(k_targets, p=0.3, shape=(B, C, H, W)).astype(
        jnp.float32)

    loss = jax.block_until_ready(weighted_dice_seesaw_loss(logits, targets))
    ref = jax.block_until_ready(_reference_loss(logits, targets))
    np.testing.assert_allclose(np.asarray(loss), np.asarray(ref),
                               rtol=5e-3, atol=1e-4)

    # Case 2: ragged shape (391 pixels) exercising the sentinel-pad path.
    B2, H2, W2 = 1, 17, 23
    logits2 = jax.random.normal(k_logits2, (B2, 1, H2, W2), dtype=jnp.float32)
    targets2 = jax.random.bernoulli(k_targets2, p=0.3,
                                    shape=(B2, 1, H2, W2)).astype(jnp.float32)
    loss2 = jax.block_until_ready(weighted_dice_seesaw_loss(logits2, targets2))
    ref2 = jax.block_until_ready(_reference_loss(logits2, targets2))
    np.testing.assert_allclose(np.asarray(loss2), np.asarray(ref2),
                               rtol=5e-3, atol=1e-4)

    print("KERNEL_OK")
</pallas_src>

<mosaic_0001>
module attributes {stable_mosaic.version = 11 : i64} {
  func.func @kernel(%arg0: i32, %arg1: i32, %arg2: memref<32x128xf32, #tpu.memory_space<vmem>>, %arg3: memref<32x128xi8, #tpu.memory_space<vmem>>, %arg4: memref<1x48x128xf32, #tpu.memory_space<vmem>>) attributes {dimension_semantics = [#tpu.dimension_semantics<parallel>, #tpu.dimension_semantics<arbitrary>], iteration_bounds = array<i64: 1, 1>, scalar_prefetch = 0 : i64, scratch_operands = 0 : i64, tpu.core_type = #tpu.core_type<tc>, window_params = [{transform_indices = @transform_0, window_bounds = array<i64: 32, 128>}, {transform_indices = @transform_1, window_bounds = array<i64: 32, 128>}, {transform_indices = @transform_2, window_bounds = array<i64: 1, 48, 128>}]} {
    %c0_i32 = arith.constant 0 : i32
    %0 = arith.cmpi eq, %arg1, %c0_i32 : i32
    %1 = arith.extui %0 : i1 to i32
    %c0_i32_0 = arith.constant 0 : i32
    %2 = arith.cmpi ne, %1, %c0_i32_0 : i32
    scf.if %2 {
      %cst_24 = arith.constant 0.000000e+00 : f32
      %63 = vector.broadcast %cst_24 : f32 to vector<48x128xf32>
      %c0_25 = arith.constant 0 : index
      %c0_26 = arith.constant 0 : index
      %c0_27 = arith.constant 0 : index
      %64 = vector.load %arg4[%c0_25, %c0_26, %c0_27] : memref<1x48x128xf32, #tpu.memory_space<vmem>>, vector<1x48x128xf32>
      %65 = vector.shape_cast %64 : vector<1x48x128xf32> to vector<48x128xf32>
      %66 = vector.shape_cast %63 : vector<48x128xf32> to vector<1x48x128xf32>
      tpu.vector_store %arg4[%c0_25, %c0_26, %c0_27], %66 {strides = array<i32>} : memref<1x48x128xf32, #tpu.memory_space<vmem>>, vector<1x48x128xf32>,
    } else {
    }
    %c0 = arith.constant 0 : index
    %c0_1 = arith.constant 0 : index
    %3 = vector.load %arg2[%c0, %c0_1] : memref<32x128xf32, #tpu.memory_space<vmem>>, vector<32x128xf32>
    %cst = arith.constant -4.000000e+01 : f32
    %cst_2 = arith.constant 4.000000e+01 : f32
    %4 = vector.broadcast %cst : f32 to vector<32x128xf32>
    %5 = arith.maximumf %4, %3 : vector<32x128xf32>
    %6 = vector.broadcast %cst_2 : f32 to vector<32x128xf32>
    %7 = arith.minimumf %6, %5 : vector<32x128xf32>
    %c0_3 = arith.constant 0 : index
    %c0_4 = arith.constant 0 : index
    %8 = vector.load %arg3[%c0_3, %c0_4] : memref<32x128xi8, #tpu.memory_space<vmem>>, vector<32x128xi8>
    %9 = arith.sitofp %8 : vector<32x128xi8> to vector<32x128xf32>
    %cst_5 = arith.constant 1.000000e+00 : f32
    %10 = vector.broadcast %cst_5 : f32 to vector<32x128xf32>
    %11 = arith.cmpf oeq, %9, %10 : vector<32x128xf32>
    %12 = arith.extui %11 : vector<32x128xi1> to vector<32x128xi32>
    %13 = arith.sitofp %12 : vector<32x128xi32> to vector<32x128xf32>
    %cst_6 = arith.constant 0.000000e+00 : f32
    %14 = vector.broadcast %cst_6 : f32 to vector<32x128xf32>
    %15 = arith.cmpf oeq, %9, %14 : vector<32x128xf32>
    %16 = arith.extui %15 : vector<32x128xi1> to vector<32x128xi32>
    %17 = arith.sitofp %16 : vector<32x128xi32> to vector<32x128xf32>
    %18 = math.exp %7 : vector<32x128xf32>
    %19 = tpu.reciprocal %18 : vector<32x128xf32> -> vector<32x128xf32>
    %20 = arith.addf %18, %19 : vector<32x128xf32>
    %cst_7 = arith.constant 9.99999997E-7 : f32
    %21 = vector.broadcast %cst_7 : f32 to vector<32x128xf32>
    %22 = arith.addf %20, %21 : vector<32x128xf32>
    %23 = tpu.reciprocal %22 {approx = true} : vector<32x128xf32> -> vector<32x128xf32>
    %24 = arith.select %11, %18, %19 : vector<32x128xi1>, vector<32x128xf32>
    %25 = arith.select %11, %19, %18 : vector<32x128xi1>, vector<32x128xf32>
    %26 = arith.mulf %24, %23 : vector<32x128xf32>
    %27 = arith.mulf %25, %25 : vector<32x128xf32>
    %28 = arith.mulf %27, %27 : vector<32x128xf32>
    %cst_8 = arith.constant 1.000000e+00 : f32
    %29 = vector.broadcast %cst_8 : f32 to vector<32x128xf32>
    %30 = arith.maximumf %29, %28 : vector<32x128xf32>
    %cst_9 = arith.constant 5.000000e+00 : f32
    %31 = vector.broadcast %cst_9 : f32 to vector<32x128xf32>
    %32 = arith.minimumf %30, %31 : vector<32x128xf32>
    %cst_10 = arith.constant 9.99999997E-7 : f32
    %33 = vector.broadcast %cst_10 : f32 to vector<32x128xf32>
    %34 = arith.addf %26, %33 : vector<32x128xf32>
    %35 = math.log %34 : vector<32x128xf32>
    %36 = arith.mulf %35, %32 : vector<32x128xf32>
    %cst_11 = arith.constant 1.000000e+00 : f32
    %37 = vector.broadcast %cst_11 : f32 to vector<32x128xf32>
    %38 = arith.addf %37, %19 : vector<32x128xf32>
    %39 = tpu.reciprocal %38 {approx = true} : vector<32x128xf32> -> vector<32x128xf32>
    %c0_12 = arith.constant 0 : index
    %c0_13 = arith.constant 0 : index
    %c0_14 = arith.constant 0 : index
    %40 = vector.load %arg4[%c0_12, %c0_13, %c0_14] : memref<1x48x128xf32, #tpu.memory_space<vmem>>, vector<1x48x128xf32>
    %41 = vector.shape_cast %40 : vector<1x48x128xf32> to vector<48x128xf32>
    %42 = arith.mulf %13, %36 : vector<32x128xf32>
    %43 = vector.shape_cast %42 : vector<32x128xf32> to vector<4x8x128xf32>
    %cst_15 = arith.constant dense<0.000000e+00> : vector<8x128xf32>
    %44 = vector.multi_reduction <add>, %43, %cst_15 [0] : vector<4x8x128xf32> to vector<8x128xf32>
    %45 = arith.mulf %17, %36 : vector<32x128xf32>
    %46 = vector.shape_cast %45 : vector<32x128xf32> to vector<4x8x128xf32>
    %cst_16 = arith.constant dense<0.000000e+00> : vector<8x128xf32>
    %47 = vector.multi_reduction <add>, %46, %cst_16 [0] : vector<4x8x128xf32> to vector<8x128xf32>
    %48 = vector.shape_cast %13 : vector<32x128xf32> to vector<4x8x128xf32>
    %cst_17 = arith.constant dense<0.000000e+00> : vector<8x128xf32>
    %49 = vector.multi_reduction <add>, %48, %cst_17 [0] : vector<4x8x128xf32> to vector<8x128xf32>
    %50 = vector.shape_cast %17 : vector<32x128xf32> to vector<4x8x128xf32>
    %cst_18 = arith.constant dense<0.000000e+00> : vector<8x128xf32>
    %51 = vector.multi_reduction <add>, %50, %cst_18 [0] : vector<4x8x128xf32> to vector<8x128xf32>
    %52 = arith.mulf %39, %13 : vector<32x128xf32>
    %53 = vector.shape_cast %52 : vector<32x128xf32> to vector<4x8x128xf32>
    %cst_19 = arith.constant dense<0.000000e+00> : vector<8x128xf32>
    %54 = vector.multi_reduction <add>, %53, %cst_19 [0] : vector<4x8x128xf32> to vector<8x128xf32>
    %55 = arith.addf %39, %13 : vector<32x128xf32>
    %56 = vector.shape_cast %55 : vector<32x128xf32> to vector<4x8x128xf32>
    %cst_20 = arith.constant dense<0.000000e+00> : vector<8x128xf32>
    %57 = vector.multi_reduction <add>, %56, %cst_20 [0] : vector<4x8x128xf32> to vector<8x128xf32>
    %58 = tpu.concatenate %44, %47, %49, %51, %54, %57 in 0 : vector<8x128xf32>, vector<8x128xf32>, vector<8x128xf32>, vector<8x128xf32>, vector<8x128xf32>, vector<8x128xf32> -> vector<48x128xf32>
    %59 = arith.addf %41, %58 : vector<48x128xf32>
    %c0_21 = arith.constant 0 : index
    %c0_22 = arith.constant 0 : index
    %c0_23 = arith.constant 0 : index
    %60 = vector.load %arg4[%c0_21, %c0_22, %c0_23] : memref<1x48x128xf32, #tpu.memory_space<vmem>>, vector<1x48x128xf32>
    %61 = vector.shape_cast %60 : vector<1x48x128xf32> to vector<48x128xf32>
    %62 = vector.shape_cast %59 : vector<48x128xf32> to vector<1x48x128xf32>
    tpu.vector_store %arg4[%c0_21, %c0_22, %c0_23], %62 {strides = array<i32>} : memref<1x48x128xf32, #tpu.memory_space<vmem>>, vector<1x48x128xf32>,
    return
  }
  func.func @transform_0(%arg0: i32, %arg1: i32) -> (i32, i32) {
    %c1_i32 = arith.constant 1 : i32
    %0 = arith.muli %arg0, %c1_i32 : i32
    %1 = arith.addi %0, %arg1 : i32
    %c0_i32 = arith.constant 0 : i32
    %c0_i32_0 = arith.constant 0 : i32
    return %1, %c0_i32 : i32, i32
  }
  func.func @transform_1(%arg0: i32, %arg1: i32) -> (i32, i32) {
    %c1_i32 = arith.constant 1 : i32
    %0 = arith.muli %arg0, %c1_i32 : i32
    %1 = arith.addi %0, %arg1 : i32
    %c0_i32 = arith.constant 0 : i32
    %c0_i32_0 = arith.constant 0 : i32
    return %1, %c0_i32 : i32, i32
  }
  func.func @transform_2(%arg0: i32, %arg1: i32) -> (i32, i32, i32) {
    %c0_i32 = arith.constant 0 : i32
    %c0_i32_0 = arith.constant 0 : i32
    %c0_i32_1 = arith.constant 0 : i32
    return %arg0, %c0_i32, %c0_i32_0 : i32, i32, i32
  }
}

</mosaic_0001>

<llo_original>
// kernel: weighted_dice_seesaw_loss.1
$region0: #{weighted_dice_seesaw_loss.1}
  #allocation0 [shape = 'u32[]', space=smem, size = 0x4, offset = 0x4, fixed_abs, tag = 'smem constant byte address 0x4 - core index']
  #allocation1 [shape = 'u32[144,128]{1,0:T(1,128)}', space=vmem, size = 0x12000, scoped, tag = 'internal scratch']
  %s0 = inlined_call_operand.vmem [shape: f32[32,128], index: 0, kind: input, shape index: {}]
  %s1 = inlined_call_operand.vmem [shape: s8[32,128], index: 1, kind: input, shape index: {}]
  %s2 = inlined_call_operand.vmem [shape: f32[1,48,128], index: 2, kind: output, shape index: {}]
  %s3 = sld [smem:[#allocation0]]
  $region22: #{weighted_dice_seesaw_loss.1} parent=0
    _
  %s5 = ssub.s32 1, %s3
  %s6 = scalar_select 0, %s5, %s3
  // Predicated region
  $region2: #{weighted_dice_seesaw_loss.1} parent=0 // pred_check
    _
  $region3: #{weighted_dice_seesaw_loss.1} parent=0 // pred_check_branch
    %8 = sbr.rel (0) target = $region5
  $region4: #{weighted_dice_seesaw_loss.1} parent=0 // pred_region
    %s9 = sadd.s32 0, 0
    %s10 = smul.u32 4, %s9
    %p11 = scmp.lt.s32.totalorder %s10, 3
    %s12 = scalar_select %p11, %s10, 3
    %s13 = smul.addr %s12, 8
    %s14 = scalar_lea.vmem %s0, %s13
    %s15 = sadd.s32 0, 0
    %s16 = smul.u32 4, %s15
  $region5: #{weighted_dice_seesaw_loss.1} parent=0 // pred_fallthru
    _
  // Predicated region
  $region6: #{weighted_dice_seesaw_loss.1} parent=0 // pred_check
    _
  $region7: #{weighted_dice_seesaw_loss.1} parent=0 // pred_check_branch
    %18 = sbr.rel (0) target = $region9
  $region8: #{weighted_dice_seesaw_loss.1} parent=0 // pred_region
    %s19 = sadd.s32 0, 0
    %p20 = scmp.lt.s32.totalorder %s19, 0
    %s21 = scalar_select %p20, %s19, 0
    %s22 = smul.addr %s21, 8
    %s23 = scalar_lea.vmem %s1, %s22
    %s24 = sadd.s32 0, 0
  $region9: #{weighted_dice_seesaw_loss.1} parent=0 // pred_fallthru
    _
  %s25 = sadd.s32 0, 0
  %s26 = smul.u32 4, %s25
  %p27 = scmp.lt.s32.totalorder %s26, 3
  %s28 = scalar_select %p27, %s26, 3
  %s29 = smul.addr %s28, 8
  %s30 = scalar_lea.vmem %s0, %s29
  %s31 = sadd.s32 0, 0
  %p32 = scmp.lt.s32.totalorder %s31, 0
  %s33 = scalar_select %p32, %s31, 0
  %s34 = smul.addr %s33, 8
  %s35 = scalar_lea.vmem %s1, %s34
  %s36 = sadd.s32 0, 0
  %s37 = smul.u32 4, %s36
  %p38 = scmp.lt.s32.totalorder %s37, 3
  %s39 = scalar_select %p38, %s37, 3
  %s40 = smul.addr %s39, 8
  %s41 = scalar_lea.vmem %s0, %s40
  %s42 = sadd.s32 0, 0
  %s43 = smul.u32 4, %s42
  %s44 = sadd.s32 0, 0
  %p45 = scmp.lt.s32.totalorder %s44, 0
  %s46 = scalar_select %p45, %s44, 0
  %s47 = smul.addr %s46, 8
  %s48 = scalar_lea.vmem %s1, %s47
  %s49 = sadd.s32 0, 0
  %p50 = scmp.eq.s32.totalorder 0, 0
  // Predicated region
  $region10: #{weighted_dice_seesaw_loss.1} parent=0 // pred_check
    %p51 = pneg %p50
  $region11: #{weighted_dice_seesaw_loss.1} parent=0 // pred_check_branch
    %53 = sbr.rel (%p51) target = $region13
  $region12: #{weighted_dice_seesaw_loss.1} parent=0 // pred_region
    %54 = vst [vmem:[%s2] sm:$0xff] 0.0
    %55 = vst [vmem:[%s2 + $0x8] sm:$0xff] 0.0
    %56 = vst [vmem:[%s2 + $0x10] sm:$0xff] 0.0
    %57 = vst [vmem:[%s2 + $0x18] sm:$0xff] 0.0
    %58 = vst [vmem:[%s2 + $0x20] sm:$0xff] 0.0
    %59 = vst [vmem:[%s2 + $0x28] sm:$0xff] 0.0
  $region13: #{weighted_dice_seesaw_loss.1} parent=0 // pred_fallthru
    _
  %v60 = vld [vmem:[%s41] sm:$0xff]
  %v61 = vld [vmem:[%s41 + $0x8] sm:$0xff]
  %v62 = vld [vmem:[%s41 + $0x10] sm:$0xff]
  %v63 = vld [vmem:[%s41 + $0x18] sm:$0xff]
  %v64 = vmax.f32 %v60, -40.0
  %v65 = vmax.f32 %v61, -40.0
  %v66 = vmax.f32 %v62, -40.0
  %v67 = vmax.f32 %v63, -40.0
  %v68 = vmin.f32 %v64, 40.0
  %v69 = vmin.f32 %v65, 40.0
  %v70 = vmin.f32 %v66, 40.0
  %v71 = vmin.f32 %v67, 40.0
  %v72 = vld [vmem:[%s48] sm:$0xff]
  %v73 = vunpack.c.0.s8 %v72
  %v74 = vunpack.c.1.s8 %v72
  %v75 = vunpack.c.2.s8 %v72
  %v76 = vunpack.c.3.s8 %v72
  %v77 = vcvt.s32.f32 %v73
  %v78 = vcvt.s32.f32 %v74
  %v79 = vcvt.s32.f32 %v75
  %v80 = vcvt.s32.f32 %v76
  %vm81 = vcmp.eq.f32.partialorder %v77, 1.0
  %vm82 = vcmp.eq.f32.partialorder %v78, 1.0
  %vm83 = vcmp.eq.f32.partialorder %v79, 1.0
  %vm84 = vcmp.eq.f32.partialorder %v80, 1.0
  %v85 = vsel %vm81, 1, 0
  %v86 = vsel %vm82, 1, 0
  %v87 = vsel %vm83, 1, 0
  %v88 = vsel %vm84, 1, 0
  %v89 = vcvt.s32.f32 %v85
  %v90 = vcvt.s32.f32 %v86
  %v91 = vcvt.s32.f32 %v87
  %v92 = vcvt.s32.f32 %v88
  %vm93 = vcmp.eq.f32.partialorder %v77, 0.0
  %vm94 = vcmp.eq.f32.partialorder %v78, 0.0
  %vm95 = vcmp.eq.f32.partialorder %v79, 0.0
  %vm96 = vcmp.eq.f32.partialorder %v80, 0.0
  %v97 = vsel %vm93, 1, 0
  %v98 = vsel %vm94, 1, 0
  %v99 = vsel %vm95, 1, 0
  %v100 = vsel %vm96, 1, 0
  %v101 = vcvt.s32.f32 %v97
  %v102 = vcvt.s32.f32 %v98
  %v103 = vcvt.s32.f32 %v99
  %v104 = vcvt.s32.f32 %v100
  %v105 = vmul.f32 %v68, 1.442695
  %v106 = vpow.pop %v105
  %v107 = vmul.f32 %v69, 1.442695
  %v108 = vpow.pop %v107
  %v109 = vmul.f32 %v70, 1.442695
  %v110 = vpow.pop %v109
  %v111 = vmul.f32 %v71, 1.442695
  %v112 = vpow.pop %v111
  %v113 = vrcp.pop %v106
  %v114 = vrcp.pop %v108
  %v115 = vrcp.pop %v110
  %v116 = vrcp.pop %v112
  %v117 = vadd.f32 %v106, %v113
  %v118 = vadd.f32 %v108, %v114
  %v119 = vadd.f32 %v110, %v115
  %v120 = vadd.f32 %v112, %v116
  %v121 = vadd.f32 %v117, 1e-06
  %v122 = vadd.f32 %v118, 1e-06
  %v123 = vadd.f32 %v119, 1e-06
  %v124 = vadd.f32 %v120, 1e-06
  %v125 = vrcp.pop %v121
  %v126 = vrcp.pop %v122
  %v127 = vrcp.pop %v123
  %v128 = vrcp.pop %v124
  %v129 = vsel %vm81, %v106, %v113
  %v130 = vsel %vm82, %v108, %v114
  %v131 = vsel %vm83, %v110, %v115
  %v132 = vsel %vm84, %v112, %v116
  %v133 = vsel %vm81, %v113, %v106
  %v134 = vsel %vm82, %v114, %v108
  %v135 = vsel %vm83, %v115, %v110
  %v136 = vsel %vm84, %v116, %v112
  %v137 = vmul.f32 %v129, %v125
  %v138 = vmul.f32 %v130, %v126
  %v139 = vmul.f32 %v131, %v127
  %v140 = vmul.f32 %v132, %v128
  %v141 = vmul.f32 %v133, %v133
  %v142 = vmul.f32 %v134, %v134
  %v143 = vmul.f32 %v135, %v135
  %v144 = vmul.f32 %v136, %v136
  %v145 = vmul.f32 %v141, %v141
  %v146 = vmul.f32 %v142, %v142
  %v147 = vmul.f32 %v143, %v143
  %v148 = vmul.f32 %v144, %v144
  %v149 = vmax.f32 %v145, 1.0
  %v150 = vmax.f32 %v146, 1.0
  %v151 = vmax.f32 %v147, 1.0
  %v152 = vmax.f32 %v148, 1.0
  %v153 = vmin.f32 %v149, 5.0
  %v154 = vmin.f32 %v150, 5.0
  %v155 = vmin.f32 %v151, 5.0
  %v156 = vmin.f32 %v152, 5.0
  %v157 = vadd.f32 %v137, 1e-06
  %v158 = vadd.f32 %v138, 1e-06
  %v159 = vadd.f32 %v139, 1e-06
  %v160 = vadd.f32 %v140, 1e-06
  %v161 = vlog2.pop %v157
  %v162 = vmul.f32 %v161, 0.6931472
  %v163 = vlog2.pop %v158
  %v164 = vmul.f32 %v163, 0.6931472
  %v165 = vlog2.pop %v159
  %v166 = vmul.f32 %v165, 0.6931472
  %v167 = vlog2.pop %v160
  %v168 = vmul.f32 %v167, 0.6931472
  %v169 = vmul.f32 %v162, %v153
  %v170 = vmul.f32 %v164, %v154
  %v171 = vmul.f32 %v166, %v155
  %v172 = vmul.f32 %v168, %v156
  %v173 = vadd.f32 %v113, 1.0
  %v174 = vadd.f32 %v114, 1.0
  %v175 = vadd.f32 %v115, 1.0
  %v176 = vadd.f32 %v116, 1.0
  %v177 = vrcp.pop %v173
  %v178 = vrcp.pop %v174
  %v179 = vrcp.pop %v175
  %v180 = vrcp.pop %v176
  %v181 = vld [vmem:[%s2] sm:$0xff]
  %v182 = vld [vmem:[%s2 + $0x8] sm:$0xff]
  %v183 = vld [vmem:[%s2 + $0x10] sm:$0xff]
  %v184 = vld [vmem:[%s2 + $0x18] sm:$0xff]
  %v185 = vld [vmem:[%s2 + $0x20] sm:$0xff]
  %v186 = vld [vmem:[%s2 + $0x28] sm:$0xff]
  %v187 = vmul.f32 %v89, %v169
  %v188 = vmul.f32 %v90, %v170
  %v189 = vmul.f32 %v91, %v171
  %v190 = vmul.f32 %v92, %v172
  %v191 = vadd.f32 %v187, %v188
  %v192 = vadd.f32 %v191, %v189
  %v193 = vadd.f32 %v192, %v190
  %v194 = vmul.f32 %v101, %v169
  %v195 = vmul.f32 %v102, %v170
  %v196 = vmul.f32 %v103, %v171
  %v197 = vmul.f32 %v104, %v172
  %v198 = vadd.f32 %v194, %v195
  %v199 = vadd.f32 %v198, %v196
  %v200 = vadd.f32 %v199, %v197
  %v201 = vadd.f32 %v89, %v90
  %v202 = vadd.f32 %v201, %v91
  %v203 = vadd.f32 %v202, %v92
  %v204 = vadd.f32 %v101, %v102
  %v205 = vadd.f32 %v204, %v103
  %v206 = vadd.f32 %v205, %v104
  %v207 = vmul.f32 %v177, %v89
  %v208 = vmul.f32 %v178, %v90
  %v209 = vmul.f32 %v179, %v91
  %v210 = vmul.f32 %v180, %v92
  %v211 = vadd.f32 %v207, %v208
  %v212 = vadd.f32 %v211, %v209
  %v213 = vadd.f32 %v212, %v210
  %v214 = vadd.f32 %v177, %v89
  %v215 = vadd.f32 %v178, %v90
  %v216 = vadd.f32 %v179, %v91
  %v217 = vadd.f32 %v180, %v92
  %v218 = vadd.f32 %v214, %v215
  %v219 = vadd.f32 %v218, %v216
  %v220 = vadd.f32 %v219, %v217
  %v221 = vadd.f32 %v181, %v193
  %v222 = vadd.f32 %v182, %v200
  %v223 = vadd.f32 %v183, %v203
  %v224 = vadd.f32 %v184, %v206
  %v225 = vadd.f32 %v185, %v213
  %v226 = vadd.f32 %v186, %v220
  %227 = vst [vmem:[%s2] sm:$0xff] %v221
  %228 = vst [vmem:[%s2 + $0x8] sm:$0xff] %v222
  %229 = vst [vmem:[%s2 + $0x10] sm:$0xff] %v223
  %230 = vst [vmem:[%s2 + $0x18] sm:$0xff] %v224
  %231 = vst [vmem:[%s2 + $0x20] sm:$0xff] %v225
  %232 = vst [vmem:[%s2 + $0x28] sm:$0xff] %v226
  // Predicated region
  $region14: #{weighted_dice_seesaw_loss.1} parent=0 // pred_check
    _
  $region15: #{weighted_dice_seesaw_loss.1} parent=0 // pred_check_branch
    %234 = sbr.rel (0) target = $region17
  $region16: #{weighted_dice_seesaw_loss.1} parent=0 // pred_region
    _
  $region17: #{weighted_dice_seesaw_loss.1} parent=0 // pred_fallthru
    _
  // Predicated region
  $region18: #{weighted_dice_seesaw_loss.1} parent=0 // pred_check
    _
  $region19: #{weighted_dice_seesaw_loss.1} parent=0 // pred_check_branch
    %236 = sbr.rel (0) target = $region21
  $region20: #{weighted_dice_seesaw_loss.1} parent=0 // pred_region
    _
  $region21: #{weighted_dice_seesaw_loss.1} parent=0 // pred_fallthru
    _

</llo_original>
